<compile_context>
chip_gen: v7x
topology: tpu7x:2x2x1
jax: 0.10.0
libtpu: 0.0.40
codegen_flags: <defaults>
</compile_context>

<pallas_src>
import jax
import jax.numpy as jnp
from jax.experimental import pallas as pl
from jax.experimental.pallas import tpu as pltpu


def dot_attn_kernel(q_ref, enc_ref, bias_ref, out_ref):
    # q_ref:    (bt, H)     last-decoder-layer queries for this batch block
    # enc_ref:  (S, bt, H)  encoder outputs, native seq-first layout
    # bias_ref: (bt, S)     additive mask bias (0 or -1e10), float32
    # out_ref:  (bt, H)     context vectors
    enc = enc_ref[...]                                   # native dtype (no full upcast)
    q = q_ref[...]
    S, bt, H = enc.shape

    # scores[s, b] = sum_h q[b, h] * enc[s, b, h]  (multiply on the VPU)
    p = enc * q[None, :, :]                              # (S, bt, H)

    sublanes = 8 * 4 // jnp.dtype(enc.dtype).itemsize    # 8 (f32) / 16 (bf16)
    if enc.dtype != jnp.float32 and bt % sublanes == 0:
        # MXU path: contract H with a ones column, accumulating in f32.
        # Keeps the 2-unit XLU off the critical path (binding slot on v7x at
        # small H); the reshapes are pure views because bt is sublane-aligned
        # for this dtype.
        ones_col = jnp.ones((H, 1), dtype=p.dtype)
        scores = jnp.dot(p.reshape(S * bt, H), ones_col,
                         preferred_element_type=jnp.float32)
        scores = scores.reshape(S, bt, 1)                # (S, bt, 1) f32
    else:
        # f32 / ragged batch tiles: plain lane reduce with f32 accumulation.
        scores = jnp.sum(p, axis=-1, keepdims=True, dtype=jnp.float32)

    # masked_fill(src_mask != 0, -1e10) == add the precomputed additive bias.
    # bias is (bt, S); the in-kernel transpose is only S*bt elements.
    bias = jnp.transpose(bias_ref[...])[:, :, None]      # (S, bt, 1) f32
    scores = scores + bias

    # softmax over the sequence axis (axis 0) in f32; EXACT divide (the
    # approximate reciprocal caused the previous 4e-3 mismatch).
    m = jnp.max(scores, axis=0, keepdims=True)           # (1, bt, 1)
    e = jnp.exp(scores - m)                              # (S, bt, 1)
    w = e / jnp.sum(e, axis=0, keepdims=True)            # (S, bt, 1)

    # context[b, h] = sum_s w[s, b] * enc[s, b, h]: multiply in the native
    # dtype, accumulate over S (the untiled axis -> cheap VPU adds) in f32.
    prod = w.astype(enc.dtype) * enc                     # (S, bt, H)
    ctx = jnp.sum(prod, axis=0, dtype=jnp.float32)       # (bt, H)
    out_ref[...] = ctx.astype(out_ref.dtype)


def _vmem_capacity_bytes():
    """Physical per-core VMEM (128 MiB v5e/v6e, 64 MiB v7x); conservative
    default when no TPU info is available."""
    try:
        cap = getattr(pltpu.get_tpu_info(), "vmem_capacity_bytes", None)
        if cap:
            return int(cap)
    except Exception:
        pass
    return 64 * 1024 * 1024


def _pick_batch_tile(B, S, H, itemsize, enc_buf_budget):
    """Pick the batch tile bt (always a divisor of B).

    Preferences, in order (per perf review):
      * the (S, bt, H) enc block fits the per-buffer VMEM budget,
      * >= 4 grid steps, even count (pipelining + v7x core split),
      * contiguous DMA run bt*H*itemsize >= 16 KiB (HBM streaming efficiency),
      * bt a multiple of 8 (layout), as large as possible.
    """
    def enc_bytes(bt):
        return S * bt * H * itemsize

    cands = sorted((bt for bt in range(8, B, 8) if B % bt == 0), reverse=True)

    for need_steps, need_run in ((4, True), (4, False), (2, False), (1, False)):
        for bt in cands:
            nb = B // bt
            if enc_bytes(bt) > enc_buf_budget:
                continue
            if nb < need_steps or (need_steps >= 4 and nb % 2):
                continue
            if need_run and bt * H * itemsize < 16 * 1024:
                continue
            return bt
    if cands:
        # Nothing fits the per-buffer budget: take the smallest legal tile
        # (vmem_limit is capped below).
        # TODO(synk): add a second "arbitrary" grid axis over S with an
        # online-softmax accumulator so the per-step block is (St, bt, H).
        return cands[-1]
    return B      # no multiple-of-8 divisor (tiny / odd batch): whole batch


def _vmem_limit_bytes(S, bt, H, itemsize, vmem_cap):
    """Explicit scoped-VMEM request: double-buffered blocks + temporaries,
    capped at 3/4 of physical VMEM (never request all of v7x's 64 MiB)."""
    enc_blk = S * bt * H * itemsize
    small_blks = 2 * bt * H * itemsize + bt * S * 4           # q + out + bias
    temps = 2 * S * bt * H * itemsize + 8 * S * bt * 4        # p/prod + softmax stats
    need = 2 * (enc_blk + small_blks) + temps + (2 << 20)
    if need <= 16 * 1024 * 1024:       # fits even v5e's default scoped limit
        return None
    return min(need, vmem_cap * 3 // 4)


def dot_attention(decoder_hidden, encoder_output, src_mask):
    """decoder_hidden (L, B, H), encoder_output (S, B, H), src_mask (S, B)
    -> context_vector (1, B, H), matching the PyTorch module."""
    L, B, H = decoder_hidden.shape
    S = encoder_output.shape[0]
    dt = encoder_output.dtype
    itemsize = jnp.dtype(dt).itemsize

    q = decoder_hidden[-1]                                # (B, H) -- cheap slice
    # Additive mask bias in (B, S) layout: only S*B elements, and it frees the
    # batch tile from the 128-lane constraint the (S, bt) mask layout imposed.
    bias = jnp.where(src_mask != 0, jnp.float32(-1e10),
                     jnp.float32(0.0)).T                  # (B, S) f32

    vmem_cap = _vmem_capacity_bytes()
    bt = _pick_batch_tile(B, S, H, itemsize, vmem_cap // 6)
    nb = B // bt
    vmem_limit = _vmem_limit_bytes(S, bt, H, itemsize, vmem_cap)

    # TODO(synk): if DMA is still exposed at shallow grids, bump the enc spec to
    # pipeline_mode=pl.Buffered(3) once the VMEM budget above has headroom.
    out = pl.pallas_call(
        dot_attn_kernel,
        out_shape=jax.ShapeDtypeStruct((B, H), dt),
        grid_spec=pltpu.PrefetchScalarGridSpec(
            num_scalar_prefetch=0,
            grid=(nb,),
            in_specs=[
                pl.BlockSpec((bt, H), lambda b: (b, 0)),          # q
                pl.BlockSpec((S, bt, H), lambda b: (0, b, 0)),    # enc, seq-first
                pl.BlockSpec((bt, S), lambda b: (b, 0)),          # mask bias
            ],
            out_specs=pl.BlockSpec((bt, H), lambda b: (b, 0)),
        ),
        compiler_params=pltpu.CompilerParams(
            dimension_semantics=("parallel",),
            vmem_limit_bytes=vmem_limit),
    )(q, encoder_output, bias)

    return out[None, :, :]                                # (1, B, H)


def _reference(decoder_hidden, encoder_output, src_mask):
    # pure-JAX reference mirroring the PyTorch code
    q = decoder_hidden[-1][None]                                   # (1, B, H)
    m = jnp.transpose(src_mask, (1, 0))[:, None, :]                # (B, 1, S)
    att = jnp.einsum('lbh,sbh->bls', q, encoder_output)            # (B, 1, S)
    att = jnp.where(m != 0, -1e10, att)
    att = jax.nn.softmax(att, axis=-1)
    ctx = jnp.sum(jnp.transpose(att, (2, 0, 1)) * encoder_output, axis=0)
    return ctx[None]                                               # (1, B, H)


if __name__ == "__main__":
    def run_case(L, B, S, H, dtype, tol):
        k1, k2, k3 = jax.random.split(jax.random.PRNGKey(0), 3)
        dh = jax.random.normal(k1, (L, B, H), jnp.float32).astype(dtype)
        eo = jax.random.normal(k2, (S, B, H), jnp.float32).astype(dtype)
        sm = (jax.random.uniform(k3, (S, B)) > 0.7).astype(jnp.int32)

        out = dot_attention(dh, eo, sm)
        jax.block_until_ready(out)
        assert out.shape == (1, B, H), out.shape

        ref = _reference(dh.astype(jnp.float32), eo.astype(jnp.float32), sm)
        err = float(jnp.max(jnp.abs(out.astype(jnp.float32) - ref)))
        assert err < tol, (B, S, H, str(dtype), err)

    # tiny spec-sized shape: single grid step, whole-batch block, f32 lane reduce
    run_case(2, 2, 8, 32, jnp.float32, 1e-4)
    # batch-tiled f32 path: bt = 8, multi-step "parallel" grid
    run_case(2, 16, 8, 32, jnp.float32, 1e-4)
    # batch-tiled bf16 path: bt = 16, MXU scores contraction, f32 softmax
    # (tolerance reflects bf16 products/weights; a wrong kernel errs at O(1))
    run_case(2, 64, 8, 32, jnp.bfloat16, 1e-1)

    print("KERNEL_OK")
</pallas_src>

<mosaic_0001>
module attributes {stable_mosaic.version = 11 : i64} {
  func.func @dot_attn_kernel(%arg0: i32, %arg1: memref<2x32xf32, #tpu.memory_space<vmem>>, %arg2: memref<8x2x32xf32, #tpu.memory_space<vmem>>, %arg3: memref<2x8xf32, #tpu.memory_space<vmem>>, %arg4: memref<2x32xf32, #tpu.memory_space<vmem>>) attributes {dimension_semantics = [#tpu.dimension_semantics<parallel>], iteration_bounds = array<i64: 1>, scalar_prefetch = 0 : i64, scratch_operands = 0 : i64, tpu.core_type = #tpu.core_type<tc>, window_params = [{transform_indices = @transform_0, window_bounds = array<i64: 2, 32>}, {transform_indices = @transform_1, window_bounds = array<i64: 8, 2, 32>}, {transform_indices = @transform_2, window_bounds = array<i64: 2, 8>}, {transform_indices = @transform_3, window_bounds = array<i64: 2, 32>}]} {
    %c0 = arith.constant 0 : index
    %c0_0 = arith.constant 0 : index
    %c0_1 = arith.constant 0 : index
    %0 = vector.load %arg2[%c0, %c0_0, %c0_1] : memref<8x2x32xf32, #tpu.memory_space<vmem>>, vector<8x2x32xf32>
    %c0_2 = arith.constant 0 : index
    %c0_3 = arith.constant 0 : index
    %1 = vector.load %arg1[%c0_2, %c0_3] : memref<2x32xf32, #tpu.memory_space<vmem>>, vector<2x32xf32>
    %2 = vector.shape_cast %1 : vector<2x32xf32> to vector<1x2x32xf32>
    %3 = vector.broadcast %2 : vector<1x2x32xf32> to vector<8x2x32xf32>
    %4 = arith.mulf %0, %3 : vector<8x2x32xf32>
    %cst = arith.constant dense<0.000000e+00> : vector<8x2xf32>
    %5 = vector.multi_reduction <add>, %4, %cst [2] : vector<8x2x32xf32> to vector<8x2xf32>
    %6 = vector.shape_cast %5 : vector<8x2xf32> to vector<8x2x1xf32>
    %c0_4 = arith.constant 0 : index
    %c0_5 = arith.constant 0 : index
    %7 = vector.load %arg3[%c0_4, %c0_5] : memref<2x8xf32, #tpu.memory_space<vmem>>, vector<2x8xf32>
    %8 = tpu.transpose %7, [1, 0] : vector<2x8xf32> -> vector<8x2xf32>
    %9 = vector.shape_cast %8 : vector<8x2xf32> to vector<8x2x1xf32>
    %10 = arith.addf %6, %9 : vector<8x2x1xf32>
    %cst_6 = arith.constant dense<0xFF800000> : vector<2x1xf32>
    %11 = vector.multi_reduction <maximumf>, %10, %cst_6 [0] : vector<8x2x1xf32> to vector<2x1xf32>
    %12 = vector.shape_cast %11 : vector<2x1xf32> to vector<1x2x1xf32>
    %13 = vector.broadcast %12 : vector<1x2x1xf32> to vector<8x2x1xf32>
    %14 = arith.subf %10, %13 : vector<8x2x1xf32>
    %15 = math.exp %14 : vector<8x2x1xf32>
    %cst_7 = arith.constant dense<0.000000e+00> : vector<2x1xf32>
    %16 = vector.multi_reduction <add>, %15, %cst_7 [0] : vector<8x2x1xf32> to vector<2x1xf32>
    %17 = vector.shape_cast %16 : vector<2x1xf32> to vector<1x2x1xf32>
    %18 = vector.broadcast %17 : vector<1x2x1xf32> to vector<8x2x1xf32>
    %19 = arith.divf %15, %18 : vector<8x2x1xf32>
    %20 = vector.broadcast %19 : vector<8x2x1xf32> to vector<8x2x32xf32>
    %21 = arith.mulf %20, %0 : vector<8x2x32xf32>
    %cst_8 = arith.constant dense<0.000000e+00> : vector<2x32xf32>
    %22 = vector.multi_reduction <add>, %21, %cst_8 [0] : vector<8x2x32xf32> to vector<2x32xf32>
    %c0_9 = arith.constant 0 : index
    %c0_10 = arith.constant 0 : index
    %23 = vector.load %arg4[%c0_9, %c0_10] : memref<2x32xf32, #tpu.memory_space<vmem>>, vector<2x32xf32>
    tpu.vector_store %arg4[%c0_9, %c0_10], %22 {strides = array<i32>} : memref<2x32xf32, #tpu.memory_space<vmem>>, vector<2x32xf32>,
    return
  }
  func.func @transform_0(%arg0: i32) -> (i32, i32) {
    %c0_i32 = arith.constant 0 : i32
    %c0_i32_0 = arith.constant 0 : i32
    return %arg0, %c0_i32 : i32, i32
  }
  func.func @transform_1(%arg0: i32) -> (i32, i32, i32) {
    %c0_i32 = arith.constant 0 : i32
    %c0_i32_0 = arith.constant 0 : i32
    %c0_i32_1 = arith.constant 0 : i32
    return %c0_i32, %arg0, %c0_i32_0 : i32, i32, i32
  }
  func.func @transform_2(%arg0: i32) -> (i32, i32) {
    %c0_i32 = arith.constant 0 : i32
    %c0_i32_0 = arith.constant 0 : i32
    return %arg0, %c0_i32 : i32, i32
  }
  func.func @transform_3(%arg0: i32) -> (i32, i32) {
    %c0_i32 = arith.constant 0 : i32
    %c0_i32_0 = arith.constant 0 : i32
    return %arg0, %c0_i32 : i32, i32
  }
}

</mosaic_0001>

<llo_original>
// kernel: tpu_custom_call.1
$region0: #{tpu_custom_call.1}
  #allocation0 [shape = 'u32[]', space=smem, size = 0x4, offset = 0x4, fixed_abs, tag = 'smem constant byte address 0x4 - core index']
  #allocation1 [shape = 'u32[144,128]{1,0:T(1,128)}', space=vmem, size = 0x12000, scoped, tag = 'internal scratch']
  %s0 = inlined_call_operand.hbm [shape: f32[2,32], index: 0, kind: input, shape index: {}]
  %s1 = inlined_call_operand.hbm [shape: f32[8,2,32], index: 1, kind: input, shape index: {}]
  %s2 = inlined_call_operand.vmem [shape: f32[2,8], index: 2, kind: input, shape index: {}]
  %s3 = inlined_call_operand.hbm [shape: f32[2,32], index: 3, kind: output, shape index: {}]
  %s4 = sld [smem:[#allocation0]]
  $region30: #{tpu_custom_call.1} parent=0
    _
  %s6 = ssub.s32 1, %s4
  %s7 = scalar_select 0, %s6, %s4
  $region1: #{tpu_custom_call.1} parent=0
    #allocation2 [shape = 'u8[1024]{0}', space=vmem, size = 0x400, scoped, tag = 'input window, operand 0, single buffered']
    #allocation3 [shape = 's32[1]{0}', space=sflag, size = 0x4, scoped, tag = 'scoped memory for tpu_custom_call.1']
    #allocation4 [shape = 's32[1]{0}', space=sflag, size = 0x4, scoped, tag = 'scoped memory for tpu_custom_call.1']
    #allocation5 [shape = 'u8[8192]{0}', space=vmem, size = 0x2000, scoped, tag = 'input window, operand 1, single buffered']
    #allocation6 [shape = 's32[1]{0}', space=sflag, size = 0x4, scoped, tag = 'scoped memory for tpu_custom_call.1']
    #allocation7 [shape = 'u8[1024]{0}', space=vmem, size = 0x400, scoped, tag = 'output window, operand 0, single buffered']
    %8 = vsyncpa [#allocation3], 0
    %9 = vsyncpa [#allocation6], 0
    %10 = vsyncpa [#allocation4], 0
    // Predicated region
    $region2: #{tpu_custom_call.1} parent=1 // pred_check
      _
    $region3: #{tpu_custom_call.1} parent=1 // pred_check_branch
      %12 = sbr.rel (0) target = $region5
    $region4: #{tpu_custom_call.1} parent=1 // pred_region
      %s14 = ssub.s32 32, 32
      %15 = vsyncadd [#allocation3], %s14
      %s17 = sshll.u32 [#allocation2], 4
      %s18 = int_to_ptr.vmem [resolvable:$true] %s17
      %20 = dma.hbm_to_vmem [thread:$0]  %s0, 32, %s18, [#allocation3]
    $region5: #{tpu_custom_call.1} parent=1 // pred_fallthru
      _
    // Predicated region
    $region6: #{tpu_custom_call.1} parent=1 // pred_check
      _
    $region7: #{tpu_custom_call.1} parent=1 // pred_check_branch
      %22 = sbr.rel (0) target = $region9
    $region8: #{tpu_custom_call.1} parent=1 // pred_region
      %s24 = ssub.s32 256, 256
      %25 = vsyncadd [#allocation6], %s24
      %s26 = sshll.u32 [#allocation5], 4
      %s27 = int_to_ptr.vmem [resolvable:$true] %s26
      %32 = dma.hbm_to_vmem [thread:$0]  %s1, 256, %s27, [#allocation6], 32, 32, 2
    $region9: #{tpu_custom_call.1} parent=1 // pred_fallthru
      _
    // Predicated region
    $region10: #{tpu_custom_call.1} parent=1 // pred_check
      _
    $region11: #{tpu_custom_call.1} parent=1 // pred_check_branch
      %34 = sbr.rel (0) target = $region13
    $region12: #{tpu_custom_call.1} parent=1 // pred_region
      _
    $region13: #{tpu_custom_call.1} parent=1 // pred_fallthru
      _
    // Predicated region
    $region14: #{tpu_custom_call.1} parent=1 // pred_check
      _
    $region15: #{tpu_custom_call.1} parent=1 // pred_check_branch
      %36 = sbr.rel (0) target = $region17
    $region16: #{tpu_custom_call.1} parent=1 // pred_region
      %37 = dma.done [#allocation3], 32
    $region17: #{tpu_custom_call.1} parent=1 // pred_fallthru
      _
    // Predicated region
    $region18: #{tpu_custom_call.1} parent=1 // pred_check
      _
    $region19: #{tpu_custom_call.1} parent=1 // pred_check_branch
      %39 = sbr.rel (0) target = $region21
    $region20: #{tpu_custom_call.1} parent=1 // pred_region
      %40 = dma.done [#allocation6], 256
    $region21: #{tpu_custom_call.1} parent=1 // pred_fallthru
      _
    %v41 = vld [vmem:[#allocation5] sm:$0x3]
    %v42 = vld [vmem:[#allocation5 + $0x2] sm:$0x3]
    %v43 = vld [vmem:[#allocation5 + $0x4] sm:$0x3]
    %v44 = vld [vmem:[#allocation5 + $0x6] sm:$0x3]
    %v45 = vld [vmem:[#allocation5 + $0x8] sm:$0x3]
    %v46 = vld [vmem:[#allocation5 + $0xa] sm:$0x3]
    %v47 = vld [vmem:[#allocation5 + $0xc] sm:$0x3]
    %v48 = vld [vmem:[#allocation5 + $0xe] sm:$0x3]
    %v49 = vld [vmem:[#allocation2] sm:$0x3]
    %v50 = vmul.f32 %v41, %v49
    %v51 = vmul.f32 %v42, %v49
    %v52 = vmul.f32 %v43, %v49
    %v53 = vmul.f32 %v44, %v49
    %v54 = vmul.f32 %v45, %v49
    %v55 = vmul.f32 %v46, %v49
    %v56 = vmul.f32 %v47, %v49
    %v57 = vmul.f32 %v48, %v49
    %vm58 = vcmask 254976
    %v59 = vsel %vm58, %v50, 0.0
    %60 = vadd.xlane.f32.xlu0 %v59
    %v61 = vpop.xlane.xlu0 %60
    %v62 = vsel %vm58, %v51, 0.0
    %63 = vadd.xlane.f32.xlu0 %v62
    %v64 = vpop.xlane.xlu0 %63
    %v65 = vsel %vm58, %v52, 0.0
    %66 = vadd.xlane.f32.xlu0 %v65
    %v67 = vpop.xlane.xlu0 %66
    %v68 = vsel %vm58, %v53, 0.0
    %69 = vadd.xlane.f32.xlu0 %v68
    %v70 = vpop.xlane.xlu0 %69
    %v71 = vsel %vm58, %v54, 0.0
    %72 = vadd.xlane.f32.xlu0 %v71
    %v73 = vpop.xlane.xlu0 %72
    %v74 = vsel %vm58, %v55, 0.0
    %75 = vadd.xlane.f32.xlu0 %v74
    %v76 = vpop.xlane.xlu0 %75
    %v77 = vsel %vm58, %v56, 0.0
    %78 = vadd.xlane.f32.xlu0 %v77
    %v79 = vpop.xlane.xlu0 %78
    %v80 = vsel %vm58, %v57, 0.0
    %81 = vadd.xlane.f32.xlu0 %v80
    %v82 = vpop.xlane.xlu0 %81
    %v83 = vld [vmem:[%s2] sm:$0x3]
    %84 = vxpose.xlu0.b32.start [1/16] %v83, 128
    %85 = vxpose.xlu0.b32.cont [2/16] 0.0, 128
    %86 = vxpose.xlu0.b32.cont [3/16] 0.0, 128
    %87 = vxpose.xlu0.b32.cont [4/16] 0.0, 128
    %88 = vxpose.xlu0.b32.cont [5/16] 0.0, 128
    %89 = vxpose.xlu0.b32.cont [6/16] 0.0, 128
    %90 = vxpose.xlu0.b32.cont [7/16] 0.0, 128
    %91 = vxpose.xlu0.b32.cont [8/16] 0.0, 128
    %92 = vxpose.xlu0.b32.cont [9/16] 0.0, 128
    %93 = vxpose.xlu0.b32.cont [10/16] 0.0, 128
    %94 = vxpose.xlu0.b32.cont [11/16] 0.0, 128
    %95 = vxpose.xlu0.b32.cont [12/16] 0.0, 128
    %96 = vxpose.xlu0.b32.cont [13/16] 0.0, 128
    %97 = vxpose.xlu0.b32.cont [14/16] 0.0, 128
    %98 = vxpose.xlu0.b32.cont [15/16] 0.0, 128
    %99 = vxpose.xlu0.b32.end [16/16] 0.0, 128
    %v100 = vpop.trf.xlu0
    %v101 = vpop.trf.xlu0
    %v102 = vpop.trf.xlu0
    %v103 = vpop.trf.xlu0
    %v104 = vpop.trf.xlu0
    %v105 = vpop.trf.xlu0
    %v106 = vpop.trf.xlu0
    %v107 = vpop.trf.xlu0
    %v108 = vpop.trf.xlu0
    %v109 = vpop.trf.xlu0
    %v110 = vpop.trf.xlu0
    %v111 = vpop.trf.xlu0
    %v112 = vpop.trf.xlu0
    %v113 = vpop.trf.xlu0
    %v114 = vpop.trf.xlu0
    %v115 = vpop.trf.xlu0
    %v116 = vlaneseq
    %v117 = vshrl.u32 %v116, 7
    %v118 = vsub.s32 0, %v117
    %v119 = vrot.slane %v100, %v118
    %121 = vbcast.lane.b32.xlu0 %v119, 256
    %v122 = vpop.permute.xlu0 %121
    %v123 = vlaneseq
    %v124 = vshrl.u32 %v123, 7
    %v125 = vsub.s32 1, %v124
    %v126 = vrot.slane %v100, %v125
    %128 = vbcast.lane.b32.xlu0 %v126, 256
    %v129 = vpop.permute.xlu0 %128
    %v130 = vlaneseq
    %v131 = vshrl.u32 %v130, 7
    %v132 = vsub.s32 2, %v131
    %v133 = vrot.slane %v100, %v132
    %135 = vbcast.lane.b32.xlu0 %v133, 256
    %v136 = vpop.permute.xlu0 %135
    %v137 = vlaneseq
    %v138 = vshrl.u32 %v137, 7
    %v139 = vsub.s32 3, %v138
    %v140 = vrot.slane %v100, %v139
    %142 = vbcast.lane.b32.xlu0 %v140, 256
    %v143 = vpop.permute.xlu0 %142
    %v144 = vlaneseq
    %v145 = vshrl.u32 %v144, 7
    %v146 = vsub.s32 4, %v145
    %v147 = vrot.slane %v100, %v146
    %149 = vbcast.lane.b32.xlu0 %v147, 256
    %v150 = vpop.permute.xlu0 %149
    %v151 = vlaneseq
    %v152 = vshrl.u32 %v151, 7
    %v153 = vsub.s32 5, %v152
    %v154 = vrot.slane %v100, %v153
    %156 = vbcast.lane.b32.xlu0 %v154, 256
    %v157 = vpop.permute.xlu0 %156
    %v158 = vlaneseq
    %v159 = vshrl.u32 %v158, 7
    %v160 = vsub.s32 6, %v159
    %v161 = vrot.slane %v100, %v160
    %163 = vbcast.lane.b32.xlu0 %v161, 256
    %v164 = vpop.permute.xlu0 %163
    %v165 = vlaneseq
    %v166 = vshrl.u32 %v165, 7
    %v167 = vsub.s32 7, %v166
    %v168 = vrot.slane %v100, %v167
    %170 = vbcast.lane.b32.xlu0 %v168, 256
    %v171 = vpop.permute.xlu0 %170
    %v172 = vadd.f32 %v61, %v122
    %v173 = vadd.f32 %v64, %v129
    %v174 = vadd.f32 %v67, %v136
    %v175 = vadd.f32 %v70, %v143
    %v176 = vadd.f32 %v73, %v150
    %v177 = vadd.f32 %v76, %v157
    %v178 = vadd.f32 %v79, %v164
    %v179 = vadd.f32 %v82, %v171
    %vm180 = vcmask 1041408
    %v181 = vsel %vm180, %v172, -inf
    %v182 = vsel %vm180, %v173, -inf
    %v183 = vsel %vm180, %v174, -inf
    %v184 = vsel %vm180, %v175, -inf
    %v185 = vsel %vm180, %v176, -inf
    %v186 = vmax.f32 %v181, %v185
    %v187 = vsel %vm180, %v177, -inf
    %v188 = vmax.f32 %v182, %v187
    %v189 = vsel %vm180, %v178, -inf
    %v190 = vmax.f32 %v183, %v189
    %v191 = vsel %vm180, %v179, -inf
    %v192 = vmax.f32 %v184, %v191
    %v193 = vmax.f32 %v186, %v188
    %v194 = vmax.f32 %v190, %v192
    %v195 = vmax.f32 %v193, %v194
    %v196 = vsub.f32 %v172, %v195
    %v197 = vsub.f32 %v173, %v195
    %v198 = vsub.f32 %v174, %v195
    %v199 = vsub.f32 %v175, %v195
    %v200 = vsub.f32 %v176, %v195
    %v201 = vsub.f32 %v177, %v195
    %v202 = vsub.f32 %v178, %v195
    %v203 = vsub.f32 %v179, %v195
    %v204 = vmul.f32 %v196, 1.442695
    %v205 = vpow.pop %v204
    %v206 = vmul.f32 %v197, 1.442695
    %v207 = vpow.pop %v206
    %v208 = vmul.f32 %v198, 1.442695
    %v209 = vpow.pop %v208
    %v210 = vmul.f32 %v199, 1.442695
    %v211 = vpow.pop %v210
    %v212 = vmul.f32 %v200, 1.442695
    %v213 = vpow.pop %v212
    %v214 = vmul.f32 %v201, 1.442695
    %v215 = vpow.pop %v214
    %v216 = vmul.f32 %v202, 1.442695
    %v217 = vpow.pop %v216
    %v218 = vmul.f32 %v203, 1.442695
    %v219 = vpow.pop %v218
    %v220 = vsel %vm180, %v205, 0.0
    %v221 = vsel %vm180, %v207, 0.0
    %v222 = vadd.f32 %v220, %v221
    %v223 = vsel %vm180, %v209, 0.0
    %v224 = vadd.f32 %v222, %v223
    %v225 = vsel %vm180, %v211, 0.0
    %v226 = vadd.f32 %v224, %v225
    %v227 = vsel %vm180, %v213, 0.0
    %v228 = vadd.f32 %v226, %v227
    %v229 = vsel %vm180, %v215, 0.0
    %v230 = vadd.f32 %v228, %v229
    %v231 = vsel %vm180, %v217, 0.0
    %v232 = vadd.f32 %v230, %v231
    %v233 = vsel %vm180, %v219, 0.0
    %v234 = vadd.f32 %v232, %v233
    %v235 = vrcp.pop %v234
    %v236 = vmul.f32 %v205, %v235
    %v237 = vmul.f32 %v207, %v235
    %v238 = vmul.f32 %v209, %v235
    %v239 = vmul.f32 %v211, %v235
    %v240 = vmul.f32 %v213, %v235
    %v241 = vmul.f32 %v215, %v235
    %v242 = vmul.f32 %v217, %v235
    %v243 = vmul.f32 %v219, %v235
    %v244 = vmul.f32 %v236, %v41
    %v245 = vmul.f32 %v237, %v42
    %v246 = vmul.f32 %v238, %v43
    %v247 = vmul.f32 %v239, %v44
    %v248 = vmul.f32 %v240, %v45
    %v249 = vmul.f32 %v241, %v46
    %v250 = vmul.f32 %v242, %v47
    %v251 = vmul.f32 %v243, %v48
    %v252 = vsel %vm58, %v244, 0.0
    %v253 = vsel %vm58, %v245, 0.0
    %v254 = vadd.f32 %v252, %v253
    %v255 = vsel %vm58, %v246, 0.0
    %v256 = vadd.f32 %v254, %v255
    %v257 = vsel %vm58, %v247, 0.0
    %v258 = vadd.f32 %v256, %v257
    %v259 = vsel %vm58, %v248, 0.0
    %v260 = vadd.f32 %v258, %v259
    %v261 = vsel %vm58, %v249, 0.0
    %v262 = vadd.f32 %v260, %v261
    %v263 = vsel %vm58, %v250, 0.0
    %v264 = vadd.f32 %v262, %v263
    %v265 = vsel %vm58, %v251, 0.0
    %v266 = vadd.f32 %v264, %v265
    %267 = vst.msk [vmem:[#allocation7] sm:$0x3] %vm58, %v266
    // Predicated region
    $region22: #{tpu_custom_call.1} parent=1 // pred_check
      _
    $region23: #{tpu_custom_call.1} parent=1 // pred_check_branch
      %269 = sbr.rel (0) target = $region25
    $region24: #{tpu_custom_call.1} parent=1 // pred_region
      %s271 = ssub.s32 32, 32
      %272 = vsyncadd [#allocation4], %s271
      %s274 = sshll.u32 [#allocation7], 4
      %s275 = int_to_ptr.vmem [resolvable:$true] %s274
      %277 = dma.vmem_to_hbm [thread:$0]  %s275, 32, %s3, [#allocation4]
    $region25: #{tpu_custom_call.1} parent=1 // pred_fallthru
      _
    // Predicated region
    $region26: #{tpu_custom_call.1} parent=1 // pred_check
      _
    $region27: #{tpu_custom_call.1} parent=1 // pred_check_branch
      %279 = sbr.rel (0) target = $region29
    $region28: #{tpu_custom_call.1} parent=1 // pred_region
      %280 = dma.done [#allocation4], 32
    $region29: #{tpu_custom_call.1} parent=1 // pred_fallthru
      _
    %281 = vsyncpa [#allocation3], 1
    %282 = vsyncpa [#allocation6], 1
    %283 = vsyncpa [#allocation4], 1

</llo_original>
